<compile_context>
chip_gen: v7x
topology: tpu7x:2x2x1
jax: 0.10.0
libtpu: 0.0.40
codegen_flags: <defaults>
</compile_context>

<pallas_src>
import math

import jax
import jax.numpy as jnp
import numpy as np
from jax.experimental import pallas as pl
from jax.experimental.pallas import tpu as pltpu


# ----------------------------------------------------------------------------
# Fused depth-loop kernel.  One grid step == one residual block:
#   residual = act
#   normed   = LayerNorm(act)                       (no affine, eps=1e-5)
#   h        = normed * g1p[layer]                  (g1p = cond@G1 + 1, hoisted)
#   h1       = SiLU(h @ W1 + b1)                    (dropout p=0 -> identity)
#   h2       = h1 @ W2 + b2
#   act      = h2 * g2p[layer] + residual           (g2p = cond@G2 + 1, hoisted)
# ----------------------------------------------------------------------------
def fused_mlp_kernel(x_ref, g1p_ref, w1_ref, b1_ref, w2_ref, b2_ref, g2p_ref,
                     o_ref, act_ref):
    d = pl.program_id(0)

    @pl.when(d == 0)
    def _():
        act_ref[...] = x_ref[...].astype(jnp.float32)

    x = act_ref[...]                                       # f32 (B, D), residual

    # LayerNorm over last dim, no affine (PyTorch eps = 1e-5) -- f32 math
    mean = jnp.mean(x, axis=-1, keepdims=True)
    var = jnp.mean(jnp.square(x - mean), axis=-1, keepdims=True)
    normed = (x - mean) * jax.lax.rsqrt(var + 1e-5)

    # adaptive-LN modulation (gamma+1 precomputed outside the kernel)
    h = normed * g1p_ref[0]

    # Linear -> SiLU -> Linear; bf16 MXU inputs, f32 accumulation
    h1 = jnp.dot(h.astype(jnp.bfloat16), w1_ref[0],
                 preferred_element_type=jnp.float32) + b1_ref[0]
    h1 = h1 * jax.nn.sigmoid(h1)                           # SiLU (exp on EUP)
    h2 = jnp.dot(h1.astype(jnp.bfloat16), w2_ref[0],
                 preferred_element_type=jnp.float32) + b2_ref[0]

    # block-out modulation + residual; activation stays f32 across depth
    act_ref[...] = h2 * g2p_ref[0] + x

    @pl.when(d == pl.num_programs(0) - 1)
    def _():
        o_ref[...] = act_ref[...].astype(o_ref.dtype)


def fused_mlp(x, g1p, w1, b1, w2, b2, g2p):
    """All depth layers in one pallas_call; activation resident in VMEM."""
    depth, B, D = g1p.shape
    W = w1.shape[-1]

    grid_spec = pltpu.PrefetchScalarGridSpec(
        num_scalar_prefetch=0,
        grid=(depth,),
        in_specs=[
            pl.BlockSpec((B, D), lambda d: (0, 0)),         # x (read once)
            pl.BlockSpec((1, B, D), lambda d: (d, 0, 0)),    # gamma1 + 1
            pl.BlockSpec((1, D, W), lambda d: (d, 0, 0)),    # W1 (bf16)
            pl.BlockSpec((1, 1, W), lambda d: (d, 0, 0)),    # b1 (f32)
            pl.BlockSpec((1, W, D), lambda d: (d, 0, 0)),    # W2 (bf16)
            pl.BlockSpec((1, 1, D), lambda d: (d, 0, 0)),    # b2 (f32)
            pl.BlockSpec((1, B, D), lambda d: (d, 0, 0)),    # gamma2 + 1
        ],
        out_specs=pl.BlockSpec((B, D), lambda d: (0, 0)),
        scratch_shapes=[pltpu.VMEM((B, D), jnp.float32)],    # persistent activation
    )

    return pl.pallas_call(
        fused_mlp_kernel,
        out_shape=jax.ShapeDtypeStruct(x.shape, x.dtype),
        grid_spec=grid_spec,
        compiler_params=pltpu.CompilerParams(
            dimension_semantics=("arbitrary",)),             # depth is sequential
        input_output_aliases={0: 0},                         # update activation in place
    )(x, g1p, w1, b1, w2, b2, g2p)


# ----------------------------------------------------------------------------
# Parameter construction (deterministic, synthetic; weights stacked on depth)
# ----------------------------------------------------------------------------
def init_params(key, dim_cond, dim_input, depth, width):
    ks = jax.random.split(key, 9)
    half = dim_cond // 2

    # LearnedSinusoidalPosEmb weights + nn.Linear(dim_cond + 1, dim_cond)
    sin_w = jax.random.normal(ks[0], (half,), jnp.float32)
    time_w = (jax.random.normal(ks[1], (dim_cond + 1, dim_cond), jnp.float32)
              / math.sqrt(dim_cond + 1))
    time_b = jax.random.normal(ks[2], (1, dim_cond), jnp.float32) * 0.01

    # NOTE: the torch module zero-inits both gamma linears; we use small
    # nonzero values so the gamma-modulation path is actually exercised.
    g1 = jax.random.normal(ks[3], (depth, dim_cond, dim_input), jnp.float32) * 0.02
    g2 = jax.random.normal(ks[4], (depth, dim_cond, dim_input), jnp.float32) * 0.02

    # Linear weights pre-transposed to [in, out]; stored bf16 for the MXU.
    w1 = (jax.random.normal(ks[5], (depth, dim_input, width), jnp.float32)
          / math.sqrt(dim_input)).astype(jnp.bfloat16)
    b1 = jax.random.normal(ks[6], (depth, 1, width), jnp.float32) * 0.01
    w2 = (jax.random.normal(ks[7], (depth, width, dim_input), jnp.float32)
          / math.sqrt(width)).astype(jnp.bfloat16)
    b2 = jax.random.normal(ks[8], (depth, 1, dim_input), jnp.float32) * 0.01

    return dict(sin_w=sin_w, time_w=time_w, time_b=time_b,
                g1=g1, g2=g2, w1=w1, b1=b1, w2=w2, b2=b2)


# ----------------------------------------------------------------------------
# Full forward pass (time embedding + gamma precompute in JAX, blocks in Pallas)
# ----------------------------------------------------------------------------
def mlp_forward(params, noised, times, cond):
    assert noised.ndim == 2
    # LearnedSinusoidalPosEmb
    t = times[:, None]                                            # (B, 1)
    freqs = t * params["sin_w"][None, :] * 2.0 * math.pi          # (B, half)
    fouriered = jnp.concatenate([jnp.sin(freqs), jnp.cos(freqs)], axis=-1)
    fouriered = jnp.concatenate([t, fouriered], axis=-1)          # (B, dim_cond+1)
    time_emb = fouriered @ params["time_w"] + params["time_b"]    # (B, dim_cond)

    c = time_emb + cond
    c = c * jax.nn.sigmoid(c)                                     # SiLU

    # cond is fixed for the whole forward: hoist the tiny gamma matmuls out of
    # the kernel and fold in the "+1" once per layer.
    g1p = jnp.einsum("bc,lcd->lbd", c, params["g1"]) + 1.0        # [depth, B, D]
    g2p = jnp.einsum("bc,lcd->lbd", c, params["g2"]) + 1.0        # [depth, B, D]

    return fused_mlp(noised, g1p, params["w1"], params["b1"],
                     params["w2"], params["b2"], g2p)


# ----------------------------------------------------------------------------
# Pure-JAX f32 reference (for correctness check)
# ----------------------------------------------------------------------------
def ref_forward(params, noised, times, cond):
    t = times[:, None]
    freqs = t * params["sin_w"][None, :] * 2.0 * math.pi
    fouriered = jnp.concatenate([jnp.sin(freqs), jnp.cos(freqs)], axis=-1)
    fouriered = jnp.concatenate([t, fouriered], axis=-1)
    time_emb = fouriered @ params["time_w"] + params["time_b"]
    c = time_emb + cond
    c = c * jax.nn.sigmoid(c)

    x = noised
    depth = params["g1"].shape[0]
    for l in range(depth):
        mean = jnp.mean(x, axis=-1, keepdims=True)
        var = jnp.mean(jnp.square(x - mean), axis=-1, keepdims=True)
        normed = (x - mean) * jax.lax.rsqrt(var + 1e-5)
        h = normed * (c @ params["g1"][l] + 1.0)
        h1 = h @ params["w1"][l].astype(jnp.float32) + params["b1"][l]
        h1 = h1 * jax.nn.sigmoid(h1)
        h2 = h1 @ params["w2"][l].astype(jnp.float32) + params["b2"][l]
        x = h2 * (c @ params["g2"][l] + 1.0) + x
    return x


if __name__ == "__main__":
    # Small but lane/sublane-dense shapes consistent with the module's forward:
    # batch=8 (full sublanes), dim_input=128 / dim_cond=128 (full lanes),
    # width=256, depth=3.
    B, DIM_COND, DIM_INPUT, DEPTH, WIDTH = 8, 128, 128, 3, 256

    key = jax.random.PRNGKey(0)
    k_param, k_noised, k_times, k_cond = jax.random.split(key, 4)

    params = init_params(k_param, DIM_COND, DIM_INPUT, DEPTH, WIDTH)
    noised = jax.random.normal(k_noised, (B, DIM_INPUT), jnp.float32)
    times = jax.random.uniform(k_times, (B,), jnp.float32)
    cond = jax.random.normal(k_cond, (B, DIM_COND), jnp.float32)

    # Reference first (kernel may alias/donate the activation buffer).
    ref = jax.block_until_ready(ref_forward(params, noised, times, cond))

    out = mlp_forward(params, noised, times, cond)
    out = jax.block_until_ready(out)

    # bf16 MXU inputs (activations cast at the MXU boundary) -> loosened tol.
    np.testing.assert_allclose(np.asarray(out), np.asarray(ref),
                               rtol=2e-2, atol=2e-2)

    print("KERNEL_OK")
</pallas_src>

<mosaic_0001>
module attributes {stable_mosaic.version = 11 : i64} {
  func.func @fused_mlp_kernel(%arg0: i32, %arg1: memref<8x128xf32, #tpu.memory_space<vmem>>, %arg2: memref<1x8x128xf32, #tpu.memory_space<vmem>>, %arg3: memref<1x128x256xbf16, #tpu.memory_space<vmem>>, %arg4: memref<1x1x256xf32, #tpu.memory_space<vmem>>, %arg5: memref<1x256x128xbf16, #tpu.memory_space<vmem>>, %arg6: memref<1x1x128xf32, #tpu.memory_space<vmem>>, %arg7: memref<1x8x128xf32, #tpu.memory_space<vmem>>, %arg8: memref<8x128xf32, #tpu.memory_space<vmem>>, %arg9: memref<8x128xf32, #tpu.memory_space<vmem>>) attributes {dimension_semantics = [#tpu.dimension_semantics<arbitrary>], iteration_bounds = array<i64: 3>, scalar_prefetch = 0 : i64, scratch_operands = 1 : i64, tpu.core_type = #tpu.core_type<tc>, window_params = [{pipeline_mode = #tpu.pipeline_mode<synchronous>, transform_indices = @transform_0, window_bounds = array<i64: 8, 128>}, {transform_indices = @transform_1, window_bounds = array<i64: 1, 8, 128>}, {transform_indices = @transform_2, window_bounds = array<i64: 1, 128, 256>}, {transform_indices = @transform_3, window_bounds = array<i64: 1, 1, 256>}, {transform_indices = @transform_4, window_bounds = array<i64: 1, 256, 128>}, {transform_indices = @transform_5, window_bounds = array<i64: 1, 1, 128>}, {transform_indices = @transform_6, window_bounds = array<i64: 1, 8, 128>}, {pipeline_mode = #tpu.pipeline_mode<synchronous>, transform_indices = @transform_7, window_bounds = array<i64: 8, 128>}]} {
    %c0_i32 = arith.constant 0 : i32
    %0 = arith.cmpi eq, %arg0, %c0_i32 : i32
    %1 = arith.extui %0 : i1 to i32
    %c0_i32_0 = arith.constant 0 : i32
    %2 = arith.cmpi ne, %1, %c0_i32_0 : i32
    scf.if %2 {
      %c0_30 = arith.constant 0 : index
      %c0_31 = arith.constant 0 : index
      %55 = vector.load %arg1[%c0_30, %c0_31] : memref<8x128xf32, #tpu.memory_space<vmem>>, vector<8x128xf32>
      %c0_32 = arith.constant 0 : index
      %c0_33 = arith.constant 0 : index
      %56 = vector.load %arg9[%c0_32, %c0_33] : memref<8x128xf32, #tpu.memory_space<vmem>>, vector<8x128xf32>
      tpu.vector_store %arg9[%c0_32, %c0_33], %55 {strides = array<i32>} : memref<8x128xf32, #tpu.memory_space<vmem>>, vector<8x128xf32>,
    } else {
    }
    %c0 = arith.constant 0 : index
    %c0_1 = arith.constant 0 : index
    %3 = vector.load %arg9[%c0, %c0_1] : memref<8x128xf32, #tpu.memory_space<vmem>>, vector<8x128xf32>
    %cst = arith.constant dense<0.000000e+00> : vector<8xf32>
    %4 = vector.multi_reduction <add>, %3, %cst [1] : vector<8x128xf32> to vector<8xf32>
    %5 = vector.shape_cast %4 : vector<8xf32> to vector<8x1xf32>
    %cst_2 = arith.constant 1.280000e+02 : f32
    %6 = vector.broadcast %cst_2 : f32 to vector<8x1xf32>
    %7 = arith.divf %5, %6 : vector<8x1xf32>
    %8 = vector.broadcast %7 : vector<8x1xf32> to vector<8x128xf32>
    %9 = arith.subf %3, %8 : vector<8x128xf32>
    %10 = arith.mulf %9, %9 : vector<8x128xf32>
    %cst_3 = arith.constant dense<0.000000e+00> : vector<8xf32>
    %11 = vector.multi_reduction <add>, %10, %cst_3 [1] : vector<8x128xf32> to vector<8xf32>
    %12 = vector.shape_cast %11 : vector<8xf32> to vector<8x1xf32>
    %cst_4 = arith.constant 1.280000e+02 : f32
    %13 = vector.broadcast %cst_4 : f32 to vector<8x1xf32>
    %14 = arith.divf %12, %13 : vector<8x1xf32>
    %15 = vector.broadcast %7 : vector<8x1xf32> to vector<8x128xf32>
    %16 = arith.subf %3, %15 : vector<8x128xf32>
    %cst_5 = arith.constant 9.99999974E-6 : f32
    %17 = vector.broadcast %cst_5 : f32 to vector<8x1xf32>
    %18 = arith.addf %14, %17 : vector<8x1xf32>
    %19 = math.rsqrt %18 : vector<8x1xf32>
    %20 = vector.broadcast %19 : vector<8x1xf32> to vector<8x128xf32>
    %21 = arith.mulf %16, %20 : vector<8x128xf32>
    %c0_6 = arith.constant 0 : index
    %c0_7 = arith.constant 0 : index
    %c0_8 = arith.constant 0 : index
    %22 = vector.load %arg2[%c0_6, %c0_7, %c0_8] : memref<1x8x128xf32, #tpu.memory_space<vmem>>, vector<1x8x128xf32>
    %23 = vector.shape_cast %22 : vector<1x8x128xf32> to vector<8x128xf32>
    %24 = arith.mulf %21, %23 : vector<8x128xf32>
    %25 = arith.truncf %24 : vector<8x128xf32> to vector<8x128xbf16>
    %c0_9 = arith.constant 0 : index
    %c0_10 = arith.constant 0 : index
    %c0_11 = arith.constant 0 : index
    %26 = vector.load %arg3[%c0_9, %c0_10, %c0_11] : memref<1x128x256xbf16, #tpu.memory_space<vmem>>, vector<1x128x256xbf16>
    %27 = vector.shape_cast %26 : vector<1x128x256xbf16> to vector<128x256xbf16>
    %cst_12 = arith.constant dense<0.000000e+00> : vector<8x256xf32>
    %28 = tpu.matmul %25, %27, %cst_12 {dimension_numbers = #tpu.dot_dimension_numbers<[1], [0], [0], [1], [0, 0, 1, 1], [], []>} : vector<8x128xbf16>, vector<128x256xbf16>, vector<8x256xf32> -> vector<8x256xf32>
    %c0_13 = arith.constant 0 : index
    %c0_14 = arith.constant 0 : index
    %c0_15 = arith.constant 0 : index
    %29 = vector.load %arg4[%c0_13, %c0_14, %c0_15] : memref<1x1x256xf32, #tpu.memory_space<vmem>>, vector<1x1x256xf32>
    %30 = vector.shape_cast %29 : vector<1x1x256xf32> to vector<1x256xf32>
    %31 = vector.broadcast %30 : vector<1x256xf32> to vector<8x256xf32>
    %32 = arith.addf %28, %31 : vector<8x256xf32>
    %33 = arith.negf %32 : vector<8x256xf32>
    %34 = math.exp %33 : vector<8x256xf32>
    %cst_16 = arith.constant 1.000000e+00 : f32
    %35 = vector.broadcast %cst_16 : f32 to vector<8x256xf32>
    %36 = arith.addf %35, %34 : vector<8x256xf32>
    %37 = arith.divf %35, %36 : vector<8x256xf32>
    %38 = arith.mulf %32, %37 : vector<8x256xf32>
    %39 = arith.truncf %38 : vector<8x256xf32> to vector<8x256xbf16>
    %c0_17 = arith.constant 0 : index
    %c0_18 = arith.constant 0 : index
    %c0_19 = arith.constant 0 : index
    %40 = vector.load %arg5[%c0_17, %c0_18, %c0_19] : memref<1x256x128xbf16, #tpu.memory_space<vmem>>, vector<1x256x128xbf16>
    %41 = vector.shape_cast %40 : vector<1x256x128xbf16> to vector<256x128xbf16>
    %cst_20 = arith.constant dense<0.000000e+00> : vector<8x128xf32>
    %42 = tpu.matmul %39, %41, %cst_20 {dimension_numbers = #tpu.dot_dimension_numbers<[1], [0], [0], [1], [0, 0, 1, 1], [], []>} : vector<8x256xbf16>, vector<256x128xbf16>, vector<8x128xf32> -> vector<8x128xf32>
    %c0_21 = arith.constant 0 : index
    %c0_22 = arith.constant 0 : index
    %c0_23 = arith.constant 0 : index
    %43 = vector.load %arg6[%c0_21, %c0_22, %c0_23] : memref<1x1x128xf32, #tpu.memory_space<vmem>>, vector<1x1x128xf32>
    %44 = vector.shape_cast %43 : vector<1x1x128xf32> to vector<1x128xf32>
    %45 = vector.broadcast %44 : vector<1x128xf32> to vector<8x128xf32>
    %46 = arith.addf %42, %45 : vector<8x128xf32>
    %c0_24 = arith.constant 0 : index
    %c0_25 = arith.constant 0 : index
    %c0_26 = arith.constant 0 : index
    %47 = vector.load %arg7[%c0_24, %c0_25, %c0_26] : memref<1x8x128xf32, #tpu.memory_space<vmem>>, vector<1x8x128xf32>
    %48 = vector.shape_cast %47 : vector<1x8x128xf32> to vector<8x128xf32>
    %49 = arith.mulf %46, %48 : vector<8x128xf32>
    %50 = arith.addf %49, %3 : vector<8x128xf32>
    %c0_27 = arith.constant 0 : index
    %c0_28 = arith.constant 0 : index
    %51 = vector.load %arg9[%c0_27, %c0_28] : memref<8x128xf32, #tpu.memory_space<vmem>>, vector<8x128xf32>
    tpu.vector_store %arg9[%c0_27, %c0_28], %50 {strides = array<i32>} : memref<8x128xf32, #tpu.memory_space<vmem>>, vector<8x128xf32>,
    %c2_i32 = arith.constant 2 : i32
    %52 = arith.cmpi eq, %arg0, %c2_i32 : i32
    %53 = arith.extui %52 : i1 to i32
    %c0_i32_29 = arith.constant 0 : i32
    %54 = arith.cmpi ne, %53, %c0_i32_29 : i32
    scf.if %54 {
      %c0_30 = arith.constant 0 : index
      %c0_31 = arith.constant 0 : index
      %55 = vector.load %arg9[%c0_30, %c0_31] : memref<8x128xf32, #tpu.memory_space<vmem>>, vector<8x128xf32>
      %c0_32 = arith.constant 0 : index
      %c0_33 = arith.constant 0 : index
      %56 = vector.load %arg8[%c0_32, %c0_33] : memref<8x128xf32, #tpu.memory_space<vmem>>, vector<8x128xf32>
      tpu.vector_store %arg8[%c0_32, %c0_33], %55 {strides = array<i32>} : memref<8x128xf32, #tpu.memory_space<vmem>>, vector<8x128xf32>,
    } else {
    }
    return
  }
  func.func @transform_0(%arg0: i32) -> (i32, i32) {
    %c0_i32 = arith.constant 0 : i32
    %c0_i32_0 = arith.constant 0 : i32
    %c0_i32_1 = arith.constant 0 : i32
    return %c0_i32, %c0_i32_0 : i32, i32
  }
  func.func @transform_1(%arg0: i32) -> (i32, i32, i32) {
    %c0_i32 = arith.constant 0 : i32
    %c0_i32_0 = arith.constant 0 : i32
    %c0_i32_1 = arith.constant 0 : i32
    return %arg0, %c0_i32, %c0_i32_0 : i32, i32, i32
  }
  func.func @transform_2(%arg0: i32) -> (i32, i32, i32) {
    %c0_i32 = arith.constant 0 : i32
    %c0_i32_0 = arith.constant 0 : i32
    %c0_i32_1 = arith.constant 0 : i32
    return %arg0, %c0_i32, %c0_i32_0 : i32, i32, i32
  }
  func.func @transform_3(%arg0: i32) -> (i32, i32, i32) {
    %c0_i32 = arith.constant 0 : i32
    %c0_i32_0 = arith.constant 0 : i32
    %c0_i32_1 = arith.constant 0 : i32
    return %arg0, %c0_i32, %c0_i32_0 : i32, i32, i32
  }
  func.func @transform_4(%arg0: i32) -> (i32, i32, i32) {
    %c0_i32 = arith.constant 0 : i32
    %c0_i32_0 = arith.constant 0 : i32
    %c0_i32_1 = arith.constant 0 : i32
    return %arg0, %c0_i32, %c0_i32_0 : i32, i32, i32
  }
  func.func @transform_5(%arg0: i32) -> (i32, i32, i32) {
    %c0_i32 = arith.constant 0 : i32
    %c0_i32_0 = arith.constant 0 : i32
    %c0_i32_1 = arith.constant 0 : i32
    return %arg0, %c0_i32, %c0_i32_0 : i32, i32, i32
  }
  func.func @transform_6(%arg0: i32) -> (i32, i32, i32) {
    %c0_i32 = arith.constant 0 : i32
    %c0_i32_0 = arith.constant 0 : i32
    %c0_i32_1 = arith.constant 0 : i32
    return %arg0, %c0_i32, %c0_i32_0 : i32, i32, i32
  }
  func.func @transform_7(%arg0: i32) -> (i32, i32) {
    %c0_i32 = arith.constant 0 : i32
    %c0_i32_0 = arith.constant 0 : i32
    %c0_i32_1 = arith.constant 0 : i32
    return %c0_i32, %c0_i32_0 : i32, i32
  }
}

</mosaic_0001>

<llo_original>
// kernel: tpu_custom_call.1
$region0: #{tpu_custom_call.1}
  #allocation0 [shape = 'u32[]', space=smem, size = 0x4, offset = 0x4, fixed_abs, tag = 'smem constant byte address 0x4 - core index']
  #allocation1 [shape = 'u32[144,128]{1,0:T(1,128)}', space=vmem, size = 0x12000, scoped, tag = 'internal scratch']
  #allocation2 [shape = 'f32[8,128]{1,0:T(8,128)}', space=vmem, size = 0x1000, scoped, tag = 'scratch operand']
  %s0 = inlined_call_operand.hbm [shape: f32[8,128], index: 0, kind: input, shape index: {}, may-alias: {0,7}]
  %s1 = inlined_call_operand.hbm [shape: f32[3,8,128], index: 1, kind: input, shape index: {}]
  %s2 = inlined_call_operand.hbm [shape: bf16[3,128,256], index: 2, kind: input, shape index: {}]
  %s3 = inlined_call_operand.vmem [shape: f32[3,1,256], index: 3, kind: input, shape index: {}]
  %s4 = inlined_call_operand.hbm [shape: bf16[3,256,128], index: 4, kind: input, shape index: {}]
  %s5 = inlined_call_operand.vmem [shape: f32[3,1,128], index: 5, kind: input, shape index: {}]
  %s6 = inlined_call_operand.vmem [shape: f32[3,8,128], index: 6, kind: input, shape index: {}]
  %s7 = inlined_call_operand.hbm [shape: f32[8,128], index: 7, kind: output, shape index: {}, may-alias: {0,7}]
  %s8 = sld [smem:[#allocation0]]
  $region85: #{tpu_custom_call.1} parent=0
    _
  %s10 = ssub.s32 1, %s8
  %s11 = scalar_select 0, %s10, %s8
  $region1: #{tpu_custom_call.1} parent=0
    #allocation3 [shape = 'u8[4096]{0}', space=vmem, size = 0x1000, scoped, tag = 'input window, operand 0, single buffered']
    #allocation4 [shape = 's32[2]{0}', space=sflag, size = 0x8, scoped, tag = 'scoped memory for tpu_custom_call.1']
    #allocation5 [shape = 's32[2]{0}', space=sflag, size = 0x8, scoped, tag = 'scoped memory for tpu_custom_call.1']
    #allocation6 [shape = 'u8[8192]{0}', space=vmem, size = 0x2000, scoped, tag = 'input window, operand 1']
    #allocation7 [shape = 's32[2]{0}', space=sflag, size = 0x8, scoped, tag = 'scoped memory for tpu_custom_call.1']
    #allocation8 [shape = 'u8[131072]{0}', space=vmem, size = 0x20000, scoped, tag = 'input window, operand 2']
    #allocation9 [shape = 'u8[131072]{0}', space=vmem, size = 0x20000, scoped, tag = 'input window, operand 4']
    #allocation10 [shape = 's32[2]{0}', space=sflag, size = 0x8, scoped, tag = 'scoped memory for tpu_custom_call.1']
    #allocation11 [shape = 'u8[4096]{0}', space=vmem, size = 0x1000, scoped, tag = 'output window, operand 0, single buffered']
    %12 = vsyncpa [#allocation4], 0
    %13 = vsyncpa [#allocation7], 0
    %s14 = scalar_lea.sflag [#allocation7], 1
    %15 = vsyncpa %s14, 0
    %16 = vsyncpa [#allocation10], 0
    %s17 = scalar_lea.sflag [#allocation10], 1
    %18 = vsyncpa %s17, 0
    %19 = vsyncpa [#allocation5], 0
    loop: start=0, step=1, limit=5
    $region2: #{tpu_custom_call.1} parent=1 // loop_pre_header
      _
    $region3: #{tpu_custom_call.1} parent=1 // loop_header
      %s21 = sphi 0, %s25
      %p22 = scmp.ge.s32.totalorder %s21, 5
      %s29 = sphi 0, %s29
      %s31 = sphi 0, %s29
      %s32 = sphi 0, %s31
      %s46 = sphi 0, %s32
      %s52 = sphi 0, %s54
      %s55 = sphi 0, %s52
      %s56 = sphi 0, %s55
      %s72 = sphi 0, %s56
      %s78 = sphi 0, %s80
      %s81 = sphi 0, %s78
      %s82 = sphi 0, %s81
      %s98 = sphi 0, %s82
      %s104 = sphi 0, %s106
      %s107 = sphi 0, %s104
      %s108 = sphi 0, %s107
      %s124 = sphi 0, %s108
      %s130 = sphi 0, %s132
      %s133 = sphi 0, %s130
      %s134 = sphi 0, %s133
      %s150 = sphi 0, %s134
      %s156 = sphi 0, %s158
      %s159 = sphi 0, %s156
      %s160 = sphi 0, %s159
      %s176 = sphi 0, %s160
      %s182 = sphi 0, %s184
      %s185 = sphi 0, %s182
      %s186 = sphi 0, %s185
      %s202 = sphi 0, %s186
      %s206 = sphi 0, %s206
      %s208 = sphi 0, %s206
      %s209 = sphi 0, %s208
      %s223 = sphi 0, %s209
    $region4: #{tpu_custom_call.1} parent=1 // loop_header_branch
      %24 = sbr.rel (%p22) target = $region8
    $region5: #{tpu_custom_call.1} parent=1 // loop_body
      %s26 = ssub.s32 %s21, 1
      %s27 = ssub.s32 %s21, 2
      %s28 = sadd.s32 %s21, 1
      %s30 = sadd.s32 %s29, 1
      %p33 = scmp.eq.s32.totalorder %s21, 2
      %p34 = scmp.ne.s32.totalorder %s29, %s31
      %p35 = scmp.eq.s32.totalorder %s21, 0
      %p36 = por %p34, %p35
      %p37 = scmp.ne.s32.totalorder %s29, %s31
      %p38 = scmp.eq.s32.totalorder %s26, 2
      %p39 = por %p37, %p38
      %p40 = scmp.ne.s32.totalorder %s31, %s32
      %p41 = scmp.eq.s32.totalorder %s26, 0
      %p42 = por %p40, %p41
      %p43 = scmp.ne.s32.totalorder %s31, %s32
      %p44 = scmp.eq.s32.totalorder %s27, 2
      %p45 = por %p43, %p44
      %p47 = scmp.ne.s32.totalorder %s32, %s46
      %p48 = scmp.eq.s32.totalorder %s27, 0
      %p49 = por %p47, %p48
      %s50 = ssub.s32 %s21, %s28
      %p51 = scmp.eq.s32.totalorder %s50, 0
      %s53 = sadd.s32 %s52, 1
      %s54 = scalar_select %p51, %s52, %s53
      %p57 = pneg %p51
      %p58 = scmp.eq.s32.totalorder %s21, 2
      %p59 = por %p57, %p58
      %p60 = scmp.ne.s32.totalorder %s52, %s55
      %p61 = scmp.eq.s32.totalorder %s21, 0
      %p62 = por %p60, %p61
      %p63 = scmp.ne.s32.totalorder %s52, %s55
      %p64 = scmp.eq.s32.totalorder %s26, 2
      %p65 = por %p63, %p64
      %p66 = scmp.ne.s32.totalorder %s55, %s56
      %p67 = scmp.eq.s32.totalorder %s26, 0
      %p68 = por %p66, %p67
      %p69 = scmp.ne.s32.totalorder %s55, %s56
      %p70 = scmp.eq.s32.totalorder %s27, 2
      %p71 = por %p69, %p70
      %p73 = scmp.ne.s32.totalorder %s56, %s72
      %p74 = scmp.eq.s32.totalorder %s27, 0
      %p75 = por %p73, %p74
      %s76 = ssub.s32 %s21, %s28
      %p77 = scmp.eq.s32.totalorder %s76, 0
      %s79 = sadd.s32 %s78, 1
      %s80 = scalar_select %p77, %s78, %s79
      %p83 = pneg %p77
      %p84 = scmp.eq.s32.totalorder %s21, 2
      %p85 = por %p83, %p84
      %p86 = scmp.ne.s32.totalorder %s78, %s81
      %p87 = scmp.eq.s32.totalorder %s21, 0
      %p88 = por %p86, %p87
      %p89 = scmp.ne.s32.totalorder %s78, %s81
      %p90 = scmp.eq.s32.totalorder %s26, 2
      %p91 = por %p89, %p90
      %p92 = scmp.ne.s32.totalorder %s81, %s82
      %p93 = scmp.eq.s32.totalorder %s26, 0
      %p94 = por %p92, %p93
      %p95 = scmp.ne.s32.totalorder %s81, %s82
      %p96 = scmp.eq.s32.totalorder %s27, 2
      %p97 = por %p95, %p96
      %p99 = scmp.ne.s32.totalorder %s82, %s98
      %p100 = scmp.eq.s32.totalorder %s27, 0
      %p101 = por %p99, %p100
      %s102 = ssub.s32 %s21, %s28
      %p103 = scmp.eq.s32.totalorder %s102, 0
      %s105 = sadd.s32 %s104, 1
      %s106 = scalar_select %p103, %s104, %s105
      %p109 = pneg %p103
      %p110 = scmp.eq.s32.totalorder %s21, 2
      %p111 = por %p109, %p110
      %p112 = scmp.ne.s32.totalorder %s104, %s107
      %p113 = scmp.eq.s32.totalorder %s21, 0
      %p114 = por %p112, %p113
      %p115 = scmp.ne.s32.totalorder %s104, %s107
      %p116 = scmp.eq.s32.totalorder %s26, 2
      %p117 = por %p115, %p116
      %p118 = scmp.ne.s32.totalorder %s107, %s108
      %p119 = scmp.eq.s32.totalorder %s26, 0
      %p120 = por %p118, %p119
      %p121 = scmp.ne.s32.totalorder %s107, %s108
      %p122 = scmp.eq.s32.totalorder %s27, 2
      %p123 = por %p121, %p122
      %p125 = scmp.ne.s32.totalorder %s108, %s124
      %p126 = scmp.eq.s32.totalorder %s27, 0
      %p127 = por %p125, %p126
      %s128 = ssub.s32 %s21, %s28
      %p129 = scmp.eq.s32.totalorder %s128, 0
      %s131 = sadd.s32 %s130, 1
      %s132 = scalar_select %p129, %s130, %s131
      %p135 = pneg %p129
      %p136 = scmp.eq.s32.totalorder %s21, 2
      %p137 = por %p135, %p136
      %p138 = scmp.ne.s32.totalorder %s130, %s133
      %p139 = scmp.eq.s32.totalorder %s21, 0
      %p140 = por %p138, %p139
      %p141 = scmp.ne.s32.totalorder %s130, %s133
      %p142 = scmp.eq.s32.totalorder %s26, 2
      %p143 = por %p141, %p142
      %p144 = scmp.ne.s32.totalorder %s133, %s134
      %p145 = scmp.eq.s32.totalorder %s26, 0
      %p146 = por %p144, %p145
      %p147 = scmp.ne.s32.totalorder %s133, %s134
      %p148 = scmp.eq.s32.totalorder %s27, 2
      %p149 = por %p147, %p148
      %p151 = scmp.ne.s32.totalorder %s134, %s150
      %p152 = scmp.eq.s32.totalorder %s27, 0
      %p153 = por %p151, %p152
      %s154 = ssub.s32 %s21, %s28
      %p155 = scmp.eq.s32.totalorder %s154, 0
      %s157 = sadd.s32 %s156, 1
      %s158 = scalar_select %p155, %s156, %s157
      %p161 = pneg %p155
      %p162 = scmp.eq.s32.totalorder %s21, 2
      %p163 = por %p161, %p162
      %p164 = scmp.ne.s32.totalorder %s156, %s159
      %p165 = scmp.eq.s32.totalorder %s21, 0
      %p166 = por %p164, %p165
      %p167 = scmp.ne.s32.totalorder %s156, %s159
      %p168 = scmp.eq.s32.totalorder %s26, 2
      %p169 = por %p167, %p168
      %p170 = scmp.ne.s32.totalorder %s159, %s160
      %p171 = scmp.eq.s32.totalorder %s26, 0
      %p172 = por %p170, %p171
      %p173 = scmp.ne.s32.totalorder %s159, %s160
      %p174 = scmp.eq.s32.totalorder %s27, 2
      %p175 = por %p173, %p174
      %p177 = scmp.ne.s32.totalorder %s160, %s176
      %p178 = scmp.eq.s32.totalorder %s27, 0
      %p179 = por %p177, %p178
      %s180 = ssub.s32 %s21, %s28
      %p181 = scmp.eq.s32.totalorder %s180, 0
      %s183 = sadd.s32 %s182, 1
      %s184 = scalar_select %p181, %s182, %s183
      %p187 = pneg %p181
      %p188 = scmp.eq.s32.totalorder %s21, 2
      %p189 = por %p187, %p188
      %p190 = scmp.ne.s32.totalorder %s182, %s185
      %p191 = scmp.eq.s32.totalorder %s21, 0
      %p192 = por %p190, %p191
      %p193 = scmp.ne.s32.totalorder %s182, %s185
      %p194 = scmp.eq.s32.totalorder %s26, 2
      %p195 = por %p193, %p194
      %p196 = scmp.ne.s32.totalorder %s185, %s186
      %p197 = scmp.eq.s32.totalorder %s26, 0
      %p198 = por %p196, %p197
      %p199 = scmp.ne.s32.totalorder %s185, %s186
      %p200 = scmp.eq.s32.totalorder %s27, 2
      %p201 = por %p199, %p200
      %p203 = scmp.ne.s32.totalorder %s186, %s202
      %p204 = scmp.eq.s32.totalorder %s27, 0
      %p205 = por %p203, %p204
      %s207 = sadd.s32 %s206, 1
      %p210 = scmp.eq.s32.totalorder %s21, 2
      %p211 = scmp.ne.s32.totalorder %s206, %s208
      %p212 = scmp.eq.s32.totalorder %s21, 0
      %p213 = por %p211, %p212
      %p214 = scmp.ne.s32.totalorder %s206, %s208
      %p215 = scmp.eq.s32.totalorder %s26, 2
      %p216 = por %p214, %p215
      %p217 = scmp.ne.s32.totalorder %s208, %s209
      %p218 = scmp.eq.s32.totalorder %s26, 0
      %p219 = por %p217, %p218
      %p220 = scmp.ne.s32.totalorder %s208, %s209
      %p221 = scmp.eq.s32.totalorder %s27, 2
      %p222 = por %p220, %p221
      %p224 = scmp.ne.s32.totalorder %s209, %s223
      %p225 = scmp.eq.s32.totalorder %s27, 0
      %p226 = por %p224, %p225
      %p227 = scmp.le.s32.totalorder 1, %s21
      %p228 = scmp.lt.s32.totalorder %s21, 4
      %p229 = pnand %p227, %p228
      %p230 = pneg %p229
      // Predicated region
      $region9: #{tpu_custom_call.1} parent=5 // pred_check
        _
      $region10: #{tpu_custom_call.1} parent=5 // pred_check_branch
        %232 = sbr.rel (%p229) target = $region12
      $region11: #{tpu_custom_call.1} parent=5 // pred_region
        %s233 = ssub.s32 %s21, 1
        // Predicated region
        $region13: #{tpu_custom_call.1} parent=11 // pred_check
          %p234 = pneg %p42
        $region14: #{tpu_custom_call.1} parent=11 // pred_check_branch
          %236 = sbr.rel (%p234) target = $region16
        $region15: #{tpu_custom_call.1} parent=11 // pred_region
          %s238 = ssub.s32 128, 128
          %239 = vsyncadd [#allocation4], %s238
          %s241 = sshll.u32 [#allocation3], 4
          %s242 = int_to_ptr.vmem [resolvable:$true] %s241
          %244 = dma.hbm_to_vmem [thread:$0]  %s0, 128, %s242, [#allocation4]
        $region16: #{tpu_custom_call.1} parent=11 // pred_fallthru
          _
      $region12: #{tpu_custom_call.1} parent=5 // pred_fallthru
        _
      %p245 = scmp.lt.s32.totalorder %s21, 3
      // Predicated region
      $region17: #{tpu_custom_call.1} parent=5 // pred_check
        %p246 = pneg %p245
      $region18: #{tpu_custom_call.1} parent=5 // pred_check_branch
        %248 = sbr.rel (%p246) target = $region20
      $region19: #{tpu_custom_call.1} parent=5 // pred_region
        // Predicated region
        $region21: #{tpu_custom_call.1} parent=19 // pred_check
          %p249 = pneg %p62
        $region22: #{tpu_custom_call.1} parent=19 // pred_check_branch
          %251 = sbr.rel (%p249) target = $region24
        $region23: #{tpu_custom_call.1} parent=19 // pred_region
          %s252 = sand.u32 %s21, 1
          %s253 = scalar_lea.sflag [#allocation7], %s252
          %s254 = sand.u32 %s52, 1
          %s255 = smul.addr %s254, 8
          %s256 = scalar_lea.vmem [#allocation6], %s255
          %s258 = ssub.s32 128, 128
          %259 = vsyncadd %s253, %s258
          %s260 = smul.addr %s21, 128
          %s261 = scalar_lea.hbm %s1, %s260
          %s263 = sshll.u32 %s256, 4
          %s264 = int_to_ptr.vmem [resolvable:$true] %s263
          %266 = dma.hbm_to_vmem [thread:$0]  %s261, 128, %s264, %s253
        $region24: #{tpu_custom_call.1} parent=19 // pred_fallthru
          _
        // Predicated region
        $region25: #{tpu_custom_call.1} parent=19 // pred_check
          %p267 = pneg %p88
        $region26: #{tpu_custom_call.1} parent=19 // pred_check_branch
          %269 = sbr.rel (%p267) target = $region28
        $region27: #{tpu_custom_call.1} parent=19 // pred_region
          %s270 = sand.u32 %s21, 1
          %s271 = scalar_lea.sflag [#allocation7], %s270
          %s272 = sand.u32 %s78, 1
          %s273 = smul.addr %s272, 128
          %s274 = scalar_lea.vmem [#allocation8], %s273
          %s276 = ssub.s32 2048, 2048
          %277 = vsyncadd %s271, %s276
          %s278 = smul.addr %s21, 32
          %s279 = smul.addr %s278, 64
          %s280 = scalar_lea.hbm %s2, %s279
          %s281 = sshll.u32 %s274, 4
          %s282 = int_to_ptr.vmem [resolvable:$true] %s281
          %287 = dma.hbm_to_vmem [thread:$0]  %s280, 2048, %s282, %s271, 128, 128, 8
        $region28: #{tpu_custom_call.1} parent=19 // pred_fallthru
          _
        // Predicated region
        $region29: #{tpu_custom_call.1} parent=19 // pred_check
          %p288 = pneg %p114
        $region30: #{tpu_custom_call.1} parent=19 // pred_check_branch
          %290 = sbr.rel (%p288) target = $region32
        $region31: #{tpu_custom_call.1} parent=19 // pred_region
          %p291 = scmp.lt.s32.totalorder %s21, 2
          %s292 = scalar_select %p291, %s21, 2
          %s293 = smul.addr %s292, 2
          %s294 = scalar_lea.vmem %s3, %s293
        $region32: #{tpu_custom_call.1} parent=19 // pred_fallthru
          _
        // Predicated region
        $region33: #{tpu_custom_call.1} parent=19 // pred_check
          %p295 = pneg %p140
        $region34: #{tpu_custom_call.1} parent=19 // pred_check_branch
          %297 = sbr.rel (%p295) target = $region36
        $region35: #{tpu_custom_call.1} parent=19 // pred_region
          %s298 = sand.u32 %s130, 1
          %s299 = scalar_lea.sflag [#allocation10], %s298
          %s300 = sand.u32 %s130, 1
          %s301 = smul.addr %s300, 128
          %s302 = scalar_lea.vmem [#allocation9], %s301
          %s304 = ssub.s32 2048, 2048
          %305 = vsyncadd %s299, %s304
          %s306 = smul.addr %s21, 32
          %s307 = smul.addr %s306, 64
          %s308 = scalar_lea.hbm %s4, %s307
          %s309 = sshll.u32 %s302, 4
          %s310 = int_to_ptr.vmem [resolvable:$true] %s309
          %315 = dma.hbm_to_vmem [thread:$0]  %s308, 2048, %s310, %s299, 64, 64, 4
        $region36: #{tpu_custom_call.1} parent=19 // pred_fallthru
          _
        // Predicated region
        $region37: #{tpu_custom_call.1} parent=19 // pred_check
          %p316 = pneg %p166
        $region38: #{tpu_custom_call.1} parent=19 // pred_check_branch
          %318 = sbr.rel (%p316) target = $region40
        $region39: #{tpu_custom_call.1} parent=19 // pred_region
          %p319 = scmp.lt.s32.totalorder %s21, 2
          %s320 = scalar_select %p319, %s21, 2
          %s321 = scalar_lea.vmem %s5, %s320
        $region40: #{tpu_custom_call.1} parent=19 // pred_fallthru
          _
        // Predicated region
        $region41: #{tpu_custom_call.1} parent=19 // pred_check
          %p322 = pneg %p192
        $region42: #{tpu_custom_call.1} parent=19 // pred_check_branch
          %324 = sbr.rel (%p322) target = $region44
        $region43: #{tpu_custom_call.1} parent=19 // pred_region
          %p325 = scmp.lt.s32.totalorder %s21, 2
          %s326 = scalar_select %p325, %s21, 2
          %s327 = smul.addr %s326, 8
          %s328 = scalar_lea.vmem %s6, %s327
        $region44: #{tpu_custom_call.1} parent=19 // pred_fallthru
          _
      $region20: #{tpu_custom_call.1} parent=5 // pred_fallthru
        _
      %p329 = scmp.le.s32.totalorder 1, %s21
      %p330 = scmp.lt.s32.totalorder %s21, 4
      %p331 = pnand %p329, %p330
      %p332 = pneg %p331
      // Predicated region
      $region45: #{tpu_custom_call.1} parent=5 // pred_check
        _
      $region46: #{tpu_custom_call.1} parent=5 // pred_check_branch
        %334 = sbr.rel (%p331) target = $region48
      $region47: #{tpu_custom_call.1} parent=5 // pred_region
        %s335 = ssub.s32 %s21, 1
        // Predicated region
        $region49: #{tpu_custom_call.1} parent=47 // pred_check
          %p336 = pneg %p42
        $region50: #{tpu_custom_call.1} parent=47 // pred_check_branch
          %338 = sbr.rel (%p336) target = $region52
        $region51: #{tpu_custom_call.1} parent=47 // pred_region
          %339 = dma.done [#allocation4], 128
        $region52: #{tpu_custom_call.1} parent=47 // pred_fallthru
          _
        %s340 = sand.u32 %s26, 1
        %s341 = scalar_lea.sflag [#allocation7], %s340
        %s342 = sand.u32 %s55, 1
        %s343 = smul.addr %s342, 8
        %s344 = scalar_lea.vmem [#allocation6], %s343
        // Predicated region
        $region53: #{tpu_custom_call.1} parent=47 // pred_check
          %p345 = pneg %p68
        $region54: #{tpu_custom_call.1} parent=47 // pred_check_branch
          %347 = sbr.rel (%p345) target = $region56
        $region55: #{tpu_custom_call.1} parent=47 // pred_region
          %348 = dma.done %s341, 128
        $region56: #{tpu_custom_call.1} parent=47 // pred_fallthru
          _
        %s349 = sand.u32 %s26, 1
        %s350 = scalar_lea.sflag [#allocation7], %s349
        %s351 = sand.u32 %s81, 1
        %s352 = smul.addr %s351, 128
        %s353 = scalar_lea.vmem [#allocation8], %s352
        // Predicated region
        $region57: #{tpu_custom_call.1} parent=47 // pred_check
          %p354 = pneg %p94
        $region58: #{tpu_custom_call.1} parent=47 // pred_check_branch
          %356 = sbr.rel (%p354) target = $region60
        $region59: #{tpu_custom_call.1} parent=47 // pred_region
          %357 = dma.done %s350, 2048
        $region60: #{tpu_custom_call.1} parent=47 // pred_fallthru
          _
        %s358 = sand.u32 %s133, 1
        %s359 = scalar_lea.sflag [#allocation10], %s358
        %s360 = sand.u32 %s133, 1
        %s361 = smul.addr %s360, 128
        %s362 = scalar_lea.vmem [#allocation9], %s361
        // Predicated region
        $region61: #{tpu_custom_call.1} parent=47 // pred_check
          %p363 = pneg %p146
        $region62: #{tpu_custom_call.1} parent=47 // pred_check_branch
          %365 = sbr.rel (%p363) target = $region64
        $region63: #{tpu_custom_call.1} parent=47 // pred_region
          %366 = dma.done %s359, 2048
        $region64: #{tpu_custom_call.1} parent=47 // pred_fallthru
          _
        %p367 = pneg %p42
        %p368 = pneg %p39
        %s369 = sand.u32 %s26, 1
        %s370 = scalar_lea.sflag [#allocation7], %s369
        %s371 = sand.u32 %s55, 1
        %s372 = smul.addr %s371, 8
        %s373 = scalar_lea.vmem [#allocation6], %s372
        %p374 = pneg %p68
        %p375 = pneg %p65
        %s376 = sand.u32 %s26, 1
        %s377 = scalar_lea.sflag [#allocation7], %s376
        %s378 = sand.u32 %s81, 1
        %s379 = smul.addr %s378, 128
        %s380 = scalar_lea.vmem [#allocation8], %s379
        %p381 = pneg %p94
        %p382 = pneg %p91
        %p383 = scmp.lt.s32.totalorder %s26, 2
        %s384 = scalar_select %p383, %s26, 2
        %s385 = smul.addr %s384, 2
        %s386 = scalar_lea.vmem %s3, %s385
        %p387 = pneg %p120
        %p388 = pneg %p117
        %s389 = sand.u32 %s133, 1
        %s390 = scalar_lea.sflag [#allocation10], %s389
        %s391 = sand.u32 %s133, 1
        %s392 = smul.addr %s391, 128
        %s393 = scalar_lea.vmem [#allocation9], %s392
        %p394 = pneg %p146
        %p395 = pneg %p143
        %p396 = scmp.lt.s32.totalorder %s26, 2
        %s397 = scalar_select %p396, %s26, 2
        %s398 = scalar_lea.vmem %s5, %s397
        %p399 = pneg %p172
        %p400 = pneg %p169
        %p401 = scmp.lt.s32.totalorder %s26, 2
        %s402 = scalar_select %p401, %s26, 2
        %s403 = smul.addr %s402, 8
        %s404 = scalar_lea.vmem %s6, %s403
        %p405 = pneg %p198
        %p406 = pneg %p195
        %p407 = pneg %p219
        %p408 = pneg %p216
        %p409 = scmp.lt.s32.totalorder %s26, 2
        %s410 = scalar_select %p409, %s26, 2
        %s411 = smul.addr %s410, 2
        %s412 = scalar_lea.vmem %s3, %s411
        %p413 = scmp.lt.s32.totalorder %s26, 2
        %s414 = scalar_select %p413, %s26, 2
        %s415 = scalar_lea.vmem %s5, %s414
        %p416 = scmp.lt.s32.totalorder %s26, 2
        %s417 = scalar_select %p416, %s26, 2
        %s418 = smul.addr %s417, 8
        %s419 = scalar_lea.vmem %s6, %s418
        %p421 = scmp.eq.s32.totalorder %s26, 0
        // Predicated region
        $region65: #{tpu_custom_call.1} parent=47 // pred_check
          %p422 = pneg %p421
        $region66: #{tpu_custom_call.1} parent=47 // pred_check_branch
          %424 = sbr.rel (%p422) target = $region68
        $region67: #{tpu_custom_call.1} parent=47 // pred_region
          %v425 = vld [vmem:[#allocation3] sm:$0xff]
          %426 = vst [vmem:[#allocation2] sm:$0xff] %v425
        $region68: #{tpu_custom_call.1} parent=47 // pred_fallthru
          _
        %v427 = vld [vmem:[#allocation2] sm:$0xff]
        %428 = vadd.xlane.f32.xlu0 %v427
        %v429 = vpop.xlane.xlu0 %428
        %v430 = vrcp.pop 128.0
        %v431 = vmul.f32 %v429, %v430
        %v432 = vsub.f32 %v427, %v431
        %v433 = vmul.f32 %v432, %v432
        %434 = vadd.xlane.f32.xlu0 %v433
        %v435 = vpop.xlane.xlu0 %434
        %v436 = vmul.f32 %v435, %v430
        %v437 = vadd.f32 %v436, 1e-05
        %v438 = vrsqrt.pop %v437
        %v439 = vmul.f32 %v432, %v438
        %v440 = vld [vmem:[%s344] sm:$0xff]
        %v441 = vmul.f32 %v439, %v440
        %v442 = vpack.c.bf16 %v441, %v441
        %v443 = vld [vmem:[%s353] sm:$0xff]
        %v444 = vld [vmem:[%s353 + $0x8] sm:$0xff]
        %v445 = vld [vmem:[%s353 + $0x10] sm:$0xff]
        %v446 = vld [vmem:[%s353 + $0x18] sm:$0xff]
        %v447 = vld [vmem:[%s353 + $0x20] sm:$0xff]
        %v448 = vld [vmem:[%s353 + $0x28] sm:$0xff]
        %v449 = vld [vmem:[%s353 + $0x30] sm:$0xff]
        %v450 = vld [vmem:[%s353 + $0x38] sm:$0xff]
        %v451 = vld [vmem:[%s353 + $0x40] sm:$0xff]
        %v452 = vld [vmem:[%s353 + $0x48] sm:$0xff]
        %v453 = vld [vmem:[%s353 + $0x50] sm:$0xff]
        %v454 = vld [vmem:[%s353 + $0x58] sm:$0xff]
        %v455 = vld [vmem:[%s353 + $0x60] sm:$0xff]
        %v456 = vld [vmem:[%s353 + $0x68] sm:$0xff]
        %v457 = vld [vmem:[%s353 + $0x70] sm:$0xff]
        %v458 = vld [vmem:[%s353 + $0x78] sm:$0xff]
        %v459 = vld [vmem:[%s412] sm:$0x3]
        %v461 = vlaneseq
        %v462 = vshrl.u32 %v461, 7
        %v463 = vsub.s32 0, %v462
        %v464 = vrot.slane %v459, %v463
        %v465 = vlaneseq
        %v466 = vshrl.u32 %v465, 7
        %v467 = vsub.s32 1, %v466
        %v468 = vrot.slane %v459, %v467
        %v487 = vunpack.c.l.b16 %v443
        %v488 = vunpack.c.h.b16 %v443
        %v489 = vunpack.c.l.b16 %v444
        %v490 = vunpack.c.h.b16 %v444
        %v491 = vunpack.c.l.b16 %v445
        %v492 = vunpack.c.h.b16 %v445
        %v493 = vunpack.c.l.b16 %v446
        %v494 = vunpack.c.h.b16 %v446
        %v495 = vunpack.c.l.b16 %v447
        %v496 = vunpack.c.h.b16 %v447
        %v497 = vunpack.c.l.b16 %v448
        %v498 = vunpack.c.h.b16 %v448
        %v499 = vunpack.c.l.b16 %v449
        %v500 = vunpack.c.h.b16 %v449
        %v501 = vunpack.c.l.b16 %v450
        %v502 = vunpack.c.h.b16 %v450
        %v503 = vunpack.c.l.b16 %v451
        %v504 = vunpack.c.h.b16 %v451
        %v505 = vunpack.c.l.b16 %v452
        %v506 = vunpack.c.h.b16 %v452
        %v507 = vunpack.c.l.b16 %v453
        %v508 = vunpack.c.h.b16 %v453
        %v509 = vunpack.c.l.b16 %v454
        %v510 = vunpack.c.h.b16 %v454
        %v511 = vunpack.c.l.b16 %v455
        %v512 = vunpack.c.h.b16 %v455
        %v513 = vunpack.c.l.b16 %v456
        %v514 = vunpack.c.h.b16 %v456
        %v515 = vunpack.c.l.b16 %v457
        %v516 = vunpack.c.h.b16 %v457
        %v517 = vunpack.c.l.b16 %v458
        %v518 = vunpack.c.h.b16 %v458
        %v519 = vpack.c.b16 %v489, %v487
        %v520 = vpack.c.b16 %v490, %v488
        %v521 = vpack.c.b16 %v493, %v491
        %v522 = vpack.c.b16 %v494, %v492
        %v523 = vpack.c.b16 %v497, %v495
        %v524 = vpack.c.b16 %v498, %v496
        %v525 = vpack.c.b16 %v501, %v499
        %v526 = vpack.c.b16 %v502, %v500
        %v527 = vpack.c.b16 %v505, %v503
        %v528 = vpack.c.b16 %v506, %v504
        %v529 = vpack.c.b16 %v509, %v507
        %v530 = vpack.c.b16 %v510, %v508
        %v531 = vpack.c.b16 %v513, %v511
        %v532 = vpack.c.b16 %v514, %v512
        %v533 = vpack.c.b16 %v517, %v515
        %v534 = vpack.c.b16 %v518, %v516
        %551 = vmatprep.subr.bf16.mxu0 %v520
        %552 = vmatpush1.bf16.msra.mxu0 %v519
        %553 = vmatprep.subr.bf16.mxu0 %v522
        %554 = vmatpush1.bf16.msra.mxu0 %v521
        %555 = vmatprep.subr.bf16.mxu0 %v524
        %556 = vmatpush1.bf16.msra.mxu0 %v523
        %557 = vmatprep.subr.bf16.mxu0 %v526
        %558 = vmatpush1.bf16.msra.mxu0 %v525
        %559 = vmatprep.subr.bf16.mxu0 %v528
        %560 = vmatpush1.bf16.msra.mxu0 %v527
        %561 = vmatprep.subr.bf16.mxu0 %v530
        %562 = vmatpush1.bf16.msra.mxu0 %v529
        %563 = vmatprep.subr.bf16.mxu0 %v532
        %564 = vmatpush1.bf16.msra.mxu0 %v531
        %565 = vmatprep.subr.bf16.mxu0 %v534
        %566 = vmatpush1.bf16.msra.mxu0 %v533
        %567 = vmatprep.subr.bf16.mxu0 0
        %568 = vmatpush1.bf16.msra.mxu0 0
        %569 = vmatprep.subr.bf16.mxu0 0
        %570 = vmatpush1.bf16.msra.mxu0 0
        %571 = vmatprep.subr.bf16.mxu0 0
        %572 = vmatpush1.bf16.msra.mxu0 0
        %573 = vmatprep.subr.bf16.mxu0 0
        %574 = vmatpush1.bf16.msra.mxu0 0
        %575 = vmatprep.subr.bf16.mxu0 0
        %576 = vmatpush1.bf16.msra.mxu0 0
        %577 = vmatprep.subr.bf16.mxu0 0
        %578 = vmatpush1.bf16.msra.mxu0 0
        %579 = vmatprep.subr.bf16.mxu0 0
        %580 = vmatpush1.bf16.msra.mxu0 0
        %581 = vmatprep.subr.bf16.mxu0 0
        %582 = vmatpush1.bf16.msra.mxu0 0
        %583 = vmatprep.mubr.bf16.mxu0 0
        %584 = vmatmul.mubr.bf16.gmra.mrb[0].mxu0 %v442
        %v585 = vpop.f32.mrb[0].mxu0
        %v586 = vadd.f32 %v464, %v585
        %v587 = vpop.f32.mrb[0].mxu0
        %v588 = vadd.f32 %v468, %v587
        %v589 = vpop.f32.mrb[0].mxu0
        %v590 = vpop.f32.mrb[0].mxu0
        %591 = vdwg.mxu0
        %v592 = vxor.u32 %v586, 2147483648
        %v593 = vxor.u32 %v588, 2147483648
        %v594 = vmul.f32 %v592, 1.442695
        %v595 = vpow.pop %v594
        %v596 = vmul.f32 %v593, 1.442695
        %v597 = vpow.pop %v596
        %v598 = vadd.f32 %v595, 1.0
        %v599 = vadd.f32 %v597, 1.0
        %v600 = vrcp.pop %v598
        %v601 = vmul.f32 1.0, %v600
        %v602 = vrcp.pop %v599
        %v603 = vmul.f32 1.0, %v602
        %v604 = vmul.f32 %v586, %v601
        %v605 = vmul.f32 %v588, %v603
        %v606 = vpack.c.bf16 %v604, %v604
        %v607 = vpack.c.bf16 %v605, %v605
        %v608 = vld [vmem:[%s362] sm:$0xf]
        %v609 = vld [vmem:[%s362 + $0x4] sm:$0xf]
        %v610 = vld [vmem:[%s362 + $0x8] sm:$0xf]
        %v611 = vld [vmem:[%s362 + $0xc] sm:$0xf]
        %v612 = vld [vmem:[%s362 + $0x10] sm:$0xf]
        %v613 = vld [vmem:[%s362 + $0x14] sm:$0xf]
        %v614 = vld [vmem:[%s362 + $0x18] sm:$0xf]
        %v615 = vld [vmem:[%s362 + $0x1c] sm:$0xf]
        %v616 = vld [vmem:[%s362 + $0x20] sm:$0xf]
        %v617 = vld [vmem:[%s362 + $0x24] sm:$0xf]
        %v618 = vld [vmem:[%s362 + $0x28] sm:$0xf]
        %v619 = vld [vmem:[%s362 + $0x2c] sm:$0xf]
        %v620 = vld [vmem:[%s362 + $0x30] sm:$0xf]
        %v621 = vld [vmem:[%s362 + $0x34] sm:$0xf]
        %v622 = vld [vmem:[%s362 + $0x38] sm:$0xf]
        %v623 = vld [vmem:[%s362 + $0x3c] sm:$0xf]
        %v624 = vld [vmem:[%s362 + $0x40] sm:$0xf]
        %v625 = vld [vmem:[%s362 + $0x44] sm:$0xf]
        %v626 = vld [vmem:[%s362 + $0x48] sm:$0xf]
        %v627 = vld [vmem:[%s362 + $0x4c] sm:$0xf]
        %v628 = vld [vmem:[%s362 + $0x50] sm:$0xf]
        %v629 = vld [vmem:[%s362 + $0x54] sm:$0xf]
        %v630 = vld [vmem:[%s362 + $0x58] sm:$0xf]
        %v631 = vld [vmem:[%s362 + $0x5c] sm:$0xf]
        %v632 = vld [vmem:[%s362 + $0x60] sm:$0xf]
        %v633 = vld [vmem:[%s362 + $0x64] sm:$0xf]
        %v634 = vld [vmem:[%s362 + $0x68] sm:$0xf]
        %v635 = vld [vmem:[%s362 + $0x6c] sm:$0xf]
        %v636 = vld [vmem:[%s362 + $0x70] sm:$0xf]
        %v637 = vld [vmem:[%s362 + $0x74] sm:$0xf]
        %v638 = vld [vmem:[%s362 + $0x78] sm:$0xf]
        %v639 = vld [vmem:[%s362 + $0x7c] sm:$0xf]
        %v640 = vld [vmem:[%s415] sm:$0x1]
        %v642 = vlaneseq
        %v643 = vshrl.u32 %v642, 7
        %v644 = vsub.s32 0, %v643
        %v645 = vrot.slane %v640, %v644
        %v679 = vunpack.c.l.b16 %v608
        %v680 = vunpack.c.l.b16 %v609
        %v681 = vunpack.c.l.b16 %v610
        %v682 = vunpack.c.l.b16 %v611
        %v683 = vunpack.c.l.b16 %v612
        %v684 = vunpack.c.l.b16 %v613
        %v685 = vunpack.c.l.b16 %v614
        %v686 = vunpack.c.l.b16 %v615
        %v687 = vunpack.c.l.b16 %v616
        %v688 = vunpack.c.l.b16 %v617
        %v689 = vunpack.c.l.b16 %v618
        %v690 = vunpack.c.l.b16 %v619
        %v691 = vunpack.c.l.b16 %v620
        %v692 = vunpack.c.l.b16 %v621
        %v693 = vunpack.c.l.b16 %v622
        %v694 = vunpack.c.l.b16 %v623
        %v695 = vunpack.c.l.b16 %v624
        %v696 = vunpack.c.l.b16 %v625
        %v697 = vunpack.c.l.b16 %v626
        %v698 = vunpack.c.l.b16 %v627
        %v699 = vunpack.c.l.b16 %v628
        %v700 = vunpack.c.l.b16 %v629
        %v701 = vunpack.c.l.b16 %v630
        %v702 = vunpack.c.l.b16 %v631
        %v703 = vunpack.c.l.b16 %v632
        %v704 = vunpack.c.l.b16 %v633
        %v705 = vunpack.c.l.b16 %v634
        %v706 = vunpack.c.l.b16 %v635
        %v707 = vunpack.c.l.b16 %v636
        %v708 = vunpack.c.l.b16 %v637
        %v709 = vunpack.c.l.b16 %v638
        %v710 = vunpack.c.l.b16 %v639
        %v711 = vpack.c.b16 %v680, %v679
        %v712 = vpack.c.b16 %v682, %v681
        %v713 = vpack.c.b16 %v684, %v683
        %v714 = vpack.c.b16 %v686, %v685
        %v715 = vpack.c.b16 %v688, %v687
        %v716 = vpack.c.b16 %v690, %v689
        %v717 = vpack.c.b16 %v692, %v691
        %v718 = vpack.c.b16 %v694, %v693
        %v719 = vpack.c.b16 %v696, %v695
        %v720 = vpack.c.b16 %v698, %v697
        %v721 = vpack.c.b16 %v700, %v699
        %v722 = vpack.c.b16 %v702, %v701
        %v723 = vpack.c.b16 %v704, %v703
        %v724 = vpack.c.b16 %v706, %v705
        %v725 = vpack.c.b16 %v708, %v707
        %v726 = vpack.c.b16 %v710, %v709
        %743 = vmatprep.subr.bf16.mxu0 0
        %744 = vmatpush1.bf16.msra.mxu0 %v711
        %745 = vmatprep.subr.bf16.mxu0 0
        %746 = vmatpush1.bf16.msra.mxu0 %v712
        %747 = vmatprep.subr.bf16.mxu0 0
        %748 = vmatpush1.bf16.msra.mxu0 %v713
        %749 = vmatprep.subr.bf16.mxu0 0
        %750 = vmatpush1.bf16.msra.mxu0 %v714
        %751 = vmatprep.subr.bf16.mxu0 0
        %752 = vmatpush1.bf16.msra.mxu0 %v715
        %753 = vmatprep.subr.bf16.mxu0 0
        %754 = vmatpush1.bf16.msra.mxu0 %v716
        %755 = vmatprep.subr.bf16.mxu0 0
        %756 = vmatpush1.bf16.msra.mxu0 %v717
        %757 = vmatprep.subr.bf16.mxu0 0
        %758 = vmatpush1.bf16.msra.mxu0 %v718
        %759 = vmatprep.subr.bf16.mxu0 0
        %760 = vmatpush1.bf16.msra.mxu0 %v719
        %761 = vmatprep.subr.bf16.mxu0 0
        %762 = vmatpush1.bf16.msra.mxu0 %v720
        %763 = vmatprep.subr.bf16.mxu0 0
        %764 = vmatpush1.bf16.msra.mxu0 %v721
        %765 = vmatprep.subr.bf16.mxu0 0
        %766 = vmatpush1.bf16.msra.mxu0 %v722
        %767 = vmatprep.subr.bf16.mxu0 0
        %768 = vmatpush1.bf16.msra.mxu0 %v723
        %769 = vmatprep.subr.bf16.mxu0 0
        %770 = vmatpush1.bf16.msra.mxu0 %v724
        %771 = vmatprep.subr.bf16.mxu0 0
        %772 = vmatpush1.bf16.msra.mxu0 %v725
        %773 = vmatprep.subr.bf16.mxu0 0
        %774 = vmatpush1.bf16.msra.mxu0 %v726
        %775 = vmatprep.mubr.bf16.mxu0 %v607
        %776 = vmatmul.mubr.bf16.gmra.mrb[0].mxu0 %v606
        %v777 = vpop.f32.mrb[0].mxu0
        %v778 = vadd.f32 %v645, %v777
        %v779 = vpop.f32.mrb[0].mxu0
        %v780 = vpop.f32.mrb[0].mxu0
        %v781 = vpop.f32.mrb[0].mxu0
        %782 = vdwg.mxu0
        %v783 = vld [vmem:[%s419] sm:$0xff]
        %v784 = vmul.f32 %v778, %v783
        %v785 = vadd.f32 %v784, %v427
        %786 = vst [vmem:[#allocation2] sm:$0xff] %v785
        %p787 = scmp.eq.s32.totalorder %s26, 2
        // Predicated region
        $region69: #{tpu_custom_call.1} parent=47 // pred_check
          %p788 = pneg %p787
        $region70: #{tpu_custom_call.1} parent=47 // pred_check_branch
          %790 = sbr.rel (%p788) target = $region72
        $region71: #{tpu_custom_call.1} parent=47 // pred_region
          %v791 = vld [vmem:[#allocation2] sm:$0xff]
          %792 = vst [vmem:[#allocation11] sm:$0xff] %v791
        $region72: #{tpu_custom_call.1} parent=47 // pred_fallthru
          _
        // Predicated region
        $region73: #{tpu_custom_call.1} parent=47 // pred_check
          %p793 = pneg %p216
        $region74: #{tpu_custom_call.1} parent=47 // pred_check_branch
          %795 = sbr.rel (%p793) target = $region76
        $region75: #{tpu_custom_call.1} parent=47 // pred_region
          %s797 = ssub.s32 128, 128
          %798 = vsyncadd [#allocation5], %s797
          %s800 = sshll.u32 [#allocation11], 4
          %s801 = int_to_ptr.vmem [resolvable:$true] %s800
          %803 = dma.vmem_to_hbm [thread:$0]  %s801, 128, %s7, [#allocation5]
        $region76: #{tpu_custom_call.1} parent=47 // pred_fallthru
          _
        // Predicated region
        $region77: #{tpu_custom_call.1} parent=47 // pred_check
          %p804 = pneg %p216
        $region78: #{tpu_custom_call.1} parent=47 // pred_check_branch
          %806 = sbr.rel (%p804) target = $region80
        $region79: #{tpu_custom_call.1} parent=47 // pred_region
          %807 = dma.done [#allocation5], 128
        $region80: #{tpu_custom_call.1} parent=47 // pred_fallthru
          _
      $region48: #{tpu_custom_call.1} parent=5 // pred_fallthru
        _
      %p808 = scmp.le.s32.totalorder 2, %s21
      // Predicated region
      $region81: #{tpu_custom_call.1} parent=5 // pred_check
        %p809 = pneg %p808
      $region82: #{tpu_custom_call.1} parent=5 // pred_check_branch
        %811 = sbr.rel (%p809) target = $region84
      $region83: #{tpu_custom_call.1} parent=5 // pred_region
        %s812 = ssub.s32 %s21, 2
      $region84: #{tpu_custom_call.1} parent=5 // pred_fallthru
        _
    $region6: #{tpu_custom_call.1} parent=1 // loop_footer
      %s25 = sadd.s32 1, %s21
    $region7: #{tpu_custom_call.1} parent=1 // loop_footer_branch
      %20 = sbr.rel target = $region3
    $region8: #{tpu_custom_call.1} parent=1 // loop_exit
      _
    %813 = vsyncpa [#allocation4], 1
    %s814 = scalar_lea.sflag [#allocation4], 1
    %815 = vsyncpa %s814, 1
    %816 = vsyncpa [#allocation7], 1
    %s817 = scalar_lea.sflag [#allocation7], 1
    %818 = vsyncpa %s817, 1
    %819 = vsyncpa [#allocation10], 1
    %s820 = scalar_lea.sflag [#allocation10], 1
    %821 = vsyncpa %s820, 1
    %822 = vsyncpa [#allocation5], 1
    %s823 = scalar_lea.sflag [#allocation5], 1
    %824 = vsyncpa %s823, 1

</llo_original>
